<compile_context>
chip_gen: v7x
topology: tpu7x:2x2x1
jax: 0.10.0
libtpu: 0.0.40
codegen_flags: <defaults>
</compile_context>

<pallas_src>
import functools

import jax
import jax.numpy as jnp
from jax.experimental import pallas as pl
from jax.experimental.pallas import tpu as pltpu

EPS = 1e-5
_LANE = 128
_TARGET_TILE_BYTES = 2 * 1024 * 1024   # per live tile buffer
_MAX_LANE_GROUPS = 128                 # static-unroll bound for the lane-group loop
_ROW_TILE_CAP = 64                     # keeps (r_tile,128) accumulators in few vregs
_VMEM_LIMIT_BYTES = 32 * 1024 * 1024   # safe on v5e / v6e / v7x


def _round_up(v, q):
    return (v + q - 1) // q * q


def _pick_r_tile(r_pad, cap=_ROW_TILE_CAP):
    """Largest multiple of 8 dividing r_pad, <= cap, preferring >=2 row blocks."""
    divs = [d for d in range(8, min(r_pad, cap) + 1, 8) if r_pad % d == 0]
    multi = [d for d in divs if r_pad // d >= 2]     # keep both TCs busy (megacore)
    return (multi or divs)[-1]


def _choose_lane_tiling(m2, r_tile, target_bytes=_TARGET_TILE_BYTES):
    """Return (m_tile, m_pad): m_tile multiple of 128 dividing m_pad >= m2."""
    cap = min(_MAX_LANE_GROUPS * _LANE,
              max(_LANE, (target_bytes // (4 * r_tile)) // _LANE * _LANE))
    m_pad128 = _round_up(m2, _LANE)
    if m_pad128 <= cap:
        return m_pad128, m_pad128                    # whole (128-padded) row per tile
    best = _LANE
    d = _LANE
    while d <= cap:
        if m_pad128 % d == 0:
            best = d
        d += _LANE
    if best >= cap // 2:
        return best, m_pad128                        # nice divisor -> no extra pad
    # Awkward factorization: pad the lane axis up to a multiple of a full tile.
    return cap, _round_up(m2, cap)


def _stats_kernel(x_ref, piv_ref, stat_ref, acc_s_ref, acc_q_ref):
    """Per-row shifted sums / sums-of-squares of the real & imag lanes."""
    m = pl.program_id(1)

    @pl.when(m == 0)
    def _():
        acc_s_ref[...] = jnp.zeros_like(acc_s_ref)
        acc_q_ref[...] = jnp.zeros_like(acc_q_ref)

    piv = piv_ref[...]                               # (r_tile, 128) pivot pattern
    s = acc_s_ref[...]
    q = acc_q_ref[...]
    n_groups = x_ref.shape[1] // _LANE
    for g in range(n_groups):                        # static unroll, aligned slices
        d = x_ref[:, g * _LANE:(g + 1) * _LANE].astype(jnp.float32) - piv
        s = s + d
        q = q + d * d                                # ~4 VALU ops / element total
    acc_s_ref[...] = s
    acc_q_ref[...] = q

    @pl.when(m == pl.num_programs(1) - 1)
    def _():                                         # epilogue: parity split + reduce
        sA = acc_s_ref[...]
        qA = acc_q_ref[...]
        lane = jax.lax.broadcasted_iota(jnp.int32, sA.shape, 1)
        is_real = (lane & 1) == 0                    # real parts live on even lanes
        s_r = jnp.sum(jnp.where(is_real, sA, 0.0), axis=-1, keepdims=True)
        s_i = jnp.sum(jnp.where(is_real, 0.0, sA), axis=-1, keepdims=True)
        q_r = jnp.sum(jnp.where(is_real, qA, 0.0), axis=-1, keepdims=True)
        q_i = jnp.sum(jnp.where(is_real, 0.0, qA), axis=-1, keepdims=True)
        stat_ref[:, 0:1] = s_r
        stat_ref[:, 1:2] = s_i
        stat_ref[:, 2:3] = q_r
        stat_ref[:, 3:4] = q_i


def _norm_kernel(x_ref, p_ref, y_ref, *, negative_slope):
    """y = x * scale + shift (per row, per complex component), opt. LeakyReLU."""
    scale = p_ref[:, 0:_LANE]                        # lane-parity interleaved scale
    shift = p_ref[:, _LANE:2 * _LANE]                # lane-parity interleaved shift
    n_groups = x_ref.shape[1] // _LANE
    for g in range(n_groups):
        sl = slice(g * _LANE, (g + 1) * _LANE)
        y = x_ref[:, sl] * scale + shift
        if negative_slope is not None:               # fused LeakyReLU, 2 ops/elem
            y = jnp.maximum(y, negative_slope * y)
        y_ref[:, sl] = y.astype(y_ref.dtype)


def cbatchnorm2d(x, gamma_r, beta_r, gamma_i, beta_i, *, eps=EPS,
                 negative_slope=None):
    """Training-mode CBatchNorm2d forward, optionally fused with LeakyReLU.

    x: (N, C, H, W, 2) float32, last dim = [real, imag].
    gamma_*/beta_*: (C,) affine parameters for the real/imag BatchNorm2d.
    negative_slope: None -> plain CBatchNorm2d; float -> fused LeakyReLU
                    (the Decoder's non-last-layer path uses 0.01).
    """
    N, C, H, W, two = x.shape
    assert two == 2
    R = N * C
    M2 = H * W * 2                                   # real/imag interleaved on lanes
    count = float(N * H * W)

    xs = x.reshape(R, M2)                            # zero-copy contiguous view

    R_pad = _round_up(R, 8)
    r_tile = _pick_r_tile(R_pad)
    m_tile, M_pad = _choose_lane_tiling(M2, r_tile)
    pad_r = R_pad - R
    pad_m = M_pad - M2
    if pad_r or pad_m:
        # Robustness path (one extra copy) — keeps lane-dense, pipelined tiles.
        xs_p = jnp.pad(xs, ((0, pad_r), (0, pad_m)))
    else:
        xs_p = xs
    grid = (R_pad // r_tile, M_pad // m_tile)

    lane = jnp.arange(_LANE)
    even = (lane % 2 == 0)[None, :]                  # (1, 128) parity pattern

    # Per-channel pivot -> shifted sums (no catastrophic cancellation in var).
    pivot_r = x[0, :, 0, 0, 0].astype(jnp.float32)   # (C,)
    pivot_i = x[0, :, 0, 0, 1].astype(jnp.float32)
    piv_row_r = jnp.tile(pivot_r, (N,))              # row -> channel = row % C
    piv_row_i = jnp.tile(pivot_i, (N,))
    pivot_lane = jnp.where(even, piv_row_r[:, None], piv_row_i[:, None])  # (R,128)
    if pad_r:
        pivot_lane = jnp.pad(pivot_lane, ((0, pad_r), (0, 0)))
    pivot_lane = pivot_lane.astype(jnp.float32)

    # ----- pass 1: tiled, pipelined per-row shifted-stats reduction ----------
    stats = pl.pallas_call(
        _stats_kernel,
        out_shape=jax.ShapeDtypeStruct((R_pad, 4), jnp.float32),
        grid=grid,
        in_specs=[pl.BlockSpec((r_tile, m_tile), lambda r, m: (r, m)),
                  pl.BlockSpec((r_tile, _LANE), lambda r, m: (r, 0))],
        out_specs=pl.BlockSpec((r_tile, 4), lambda r, m: (r, 0)),
        scratch_shapes=[pltpu.VMEM((r_tile, _LANE), jnp.float32),
                        pltpu.VMEM((r_tile, _LANE), jnp.float32)],
        compiler_params=pltpu.CompilerParams(
            dimension_semantics=("parallel", "arbitrary"),
            vmem_limit_bytes=_VMEM_LIMIT_BYTES),
    )(xs_p, pivot_lane)

    # ----- tiny O(C) fold: (shifted) sums -> mean/var -> scale/shift ---------
    S = stats[:R].reshape(N, C, 4).sum(axis=0)       # (C, 4)
    s_r, s_i, q_r, q_i = S[:, 0], S[:, 1], S[:, 2], S[:, 3]
    # Remove the zero-padded lanes' contribution (each held d = 0 - pivot).
    pad_cnt = float(N * (pad_m // 2))                # padded lanes / component / chan
    if pad_cnt:
        s_r = s_r + pad_cnt * pivot_r
        s_i = s_i + pad_cnt * pivot_i
        q_r = q_r - pad_cnt * pivot_r * pivot_r
        q_i = q_i - pad_cnt * pivot_i * pivot_i
    mean_d_r = s_r / count
    mean_d_i = s_i / count
    mean_r = pivot_r + mean_d_r
    mean_i = pivot_i + mean_d_i
    var_r = jnp.maximum(q_r / count - mean_d_r * mean_d_r, 0.0)   # biased variance
    var_i = jnp.maximum(q_i / count - mean_d_i * mean_d_i, 0.0)

    scale_r = gamma_r.astype(jnp.float32) * jax.lax.rsqrt(var_r + eps)
    scale_i = gamma_i.astype(jnp.float32) * jax.lax.rsqrt(var_i + eps)
    shift_r = beta_r.astype(jnp.float32) - mean_r * scale_r
    shift_i = beta_i.astype(jnp.float32) - mean_i * scale_i

    row_scale = jnp.where(even, jnp.tile(scale_r, (N,))[:, None],
                          jnp.tile(scale_i, (N,))[:, None])       # (R, 128)
    row_shift = jnp.where(even, jnp.tile(shift_r, (N,))[:, None],
                          jnp.tile(shift_i, (N,))[:, None])
    params = jnp.concatenate([row_scale, row_shift], axis=-1)     # (R, 256)
    if pad_r:
        params = jnp.pad(params, ((0, pad_r), (0, 0)))
    params = params.astype(jnp.float32)

    # ----- pass 2: tiled normalize (+ LeakyReLU), lane-dense stores ----------
    ys = pl.pallas_call(
        functools.partial(_norm_kernel, negative_slope=negative_slope),
        out_shape=jax.ShapeDtypeStruct((R_pad, M_pad), x.dtype),
        grid=grid,
        in_specs=[pl.BlockSpec((r_tile, m_tile), lambda r, m: (r, m)),
                  pl.BlockSpec((r_tile, 2 * _LANE), lambda r, m: (r, 0))],
        out_specs=pl.BlockSpec((r_tile, m_tile), lambda r, m: (r, m)),
        compiler_params=pltpu.CompilerParams(
            dimension_semantics=("parallel", "parallel"),
            vmem_limit_bytes=_VMEM_LIMIT_BYTES),
    )(xs_p, params)

    if pad_r or pad_m:
        ys = ys[:R, :M2]
    return ys.reshape(N, C, H, W, 2)


def _ref_cbn(x, gamma_r, beta_r, gamma_i, beta_i, negative_slope=None):
    """Pure-JAX reference: training-mode BatchNorm2d on each complex component."""
    def bn(xc, g, b):
        mean = jnp.mean(xc, axis=(0, 2, 3), keepdims=True)
        var = jnp.mean((xc - mean) ** 2, axis=(0, 2, 3), keepdims=True)
        return (xc - mean) / jnp.sqrt(var + EPS) * g.reshape(1, -1, 1, 1) \
            + b.reshape(1, -1, 1, 1)
    out = jnp.stack([bn(x[..., 0], gamma_r, beta_r),
                     bn(x[..., 1], gamma_i, beta_i)], axis=-1)
    if negative_slope is not None:
        out = jnp.where(out >= 0, out, negative_slope * out)
    return out


if __name__ == "__main__":
    key = jax.random.PRNGKey(0)
    N, C, H, W = 2, 4, 16, 16
    kx, kgr, kbr, kgi, kbi, kx2 = jax.random.split(key, 6)

    x = jax.random.normal(kx, (N, C, H, W, 2), dtype=jnp.float32)

    gamma_r = 1.0 + 0.1 * jax.random.normal(kgr, (C,), dtype=jnp.float32)
    beta_r = 0.1 * jax.random.normal(kbr, (C,), dtype=jnp.float32)
    gamma_i = 1.0 + 0.1 * jax.random.normal(kgi, (C,), dtype=jnp.float32)
    beta_i = 0.1 * jax.random.normal(kbi, (C,), dtype=jnp.float32)

    # Pure CBatchNorm2d forward + Decoder tail (BN + LeakyReLU(0.01) fused).
    out_bn = jax.block_until_ready(
        cbatchnorm2d(x, gamma_r, beta_r, gamma_i, beta_i))
    out_act = jax.block_until_ready(
        cbatchnorm2d(x, gamma_r, beta_r, gamma_i, beta_i, negative_slope=0.01))

    ref_bn_out = _ref_cbn(x, gamma_r, beta_r, gamma_i, beta_i)
    ref_act_out = _ref_cbn(x, gamma_r, beta_r, gamma_i, beta_i, 0.01)

    assert out_bn.shape == (N, C, H, W, 2)
    assert out_act.shape == (N, C, H, W, 2)
    assert float(jnp.max(jnp.abs(out_bn - ref_bn_out))) < 5e-4
    assert float(jnp.max(jnp.abs(out_act - ref_act_out))) < 5e-4

    # Exercise the padded fallback path (rows not multiple of 8, lanes not
    # multiple of 128) with an awkward small shape, to validate robustness.
    N2, C2, H2, W2 = 2, 3, 5, 7
    x2 = jax.random.normal(kx2, (N2, C2, H2, W2, 2), dtype=jnp.float32) + 0.5
    g2 = jnp.ones((C2,), jnp.float32)
    b2 = jnp.zeros((C2,), jnp.float32)
    out2 = jax.block_until_ready(
        cbatchnorm2d(x2, g2, b2, g2, b2, negative_slope=0.01))
    ref2 = _ref_cbn(x2, g2, b2, g2, b2, 0.01)
    assert out2.shape == (N2, C2, H2, W2, 2)
    assert float(jnp.max(jnp.abs(out2 - ref2))) < 5e-4

    print("KERNEL_OK")
</pallas_src>

<mosaic_0001>
module attributes {stable_mosaic.version = 11 : i64} {
  func.func @_stats_kernel(%arg0: i32, %arg1: i32, %arg2: memref<8x512xf32, #tpu.memory_space<vmem>>, %arg3: memref<8x128xf32, #tpu.memory_space<vmem>>, %arg4: memref<8x4xf32, #tpu.memory_space<vmem>>, %arg5: memref<8x128xf32, #tpu.memory_space<vmem>>, %arg6: memref<8x128xf32, #tpu.memory_space<vmem>>) attributes {dimension_semantics = [#tpu.dimension_semantics<parallel>, #tpu.dimension_semantics<arbitrary>], iteration_bounds = array<i64: 1, 1>, scalar_prefetch = 0 : i64, scratch_operands = 2 : i64, tpu.core_type = #tpu.core_type<tc>, window_params = [{transform_indices = @transform_0, window_bounds = array<i64: 8, 512>}, {transform_indices = @transform_1, window_bounds = array<i64: 8, 128>}, {transform_indices = @transform_2, window_bounds = array<i64: 8, 4>}]} {
    %c0_i32 = arith.constant 0 : i32
    %0 = arith.cmpi eq, %arg1, %c0_i32 : i32
    %1 = arith.extui %0 : i1 to i32
    %c0_i32_0 = arith.constant 0 : i32
    %2 = arith.cmpi ne, %1, %c0_i32_0 : i32
    scf.if %2 {
      %cst = arith.constant 0.000000e+00 : f32
      %31 = vector.broadcast %cst : f32 to vector<8x128xf32>
      %c0_17 = arith.constant 0 : index
      %c0_18 = arith.constant 0 : index
      %32 = vector.load %arg5[%c0_17, %c0_18] : memref<8x128xf32, #tpu.memory_space<vmem>>, vector<8x128xf32>
      tpu.vector_store %arg5[%c0_17, %c0_18], %31 {strides = array<i32>} : memref<8x128xf32, #tpu.memory_space<vmem>>, vector<8x128xf32>,
      %cst_19 = arith.constant 0.000000e+00 : f32
      %33 = vector.broadcast %cst_19 : f32 to vector<8x128xf32>
      %c0_20 = arith.constant 0 : index
      %c0_21 = arith.constant 0 : index
      %34 = vector.load %arg6[%c0_20, %c0_21] : memref<8x128xf32, #tpu.memory_space<vmem>>, vector<8x128xf32>
      tpu.vector_store %arg6[%c0_20, %c0_21], %33 {strides = array<i32>} : memref<8x128xf32, #tpu.memory_space<vmem>>, vector<8x128xf32>,
    } else {
    }
    %c0 = arith.constant 0 : index
    %c0_1 = arith.constant 0 : index
    %3 = vector.load %arg3[%c0, %c0_1] : memref<8x128xf32, #tpu.memory_space<vmem>>, vector<8x128xf32>
    %c0_2 = arith.constant 0 : index
    %c0_3 = arith.constant 0 : index
    %4 = vector.load %arg5[%c0_2, %c0_3] : memref<8x128xf32, #tpu.memory_space<vmem>>, vector<8x128xf32>
    %c0_4 = arith.constant 0 : index
    %c0_5 = arith.constant 0 : index
    %5 = vector.load %arg6[%c0_4, %c0_5] : memref<8x128xf32, #tpu.memory_space<vmem>>, vector<8x128xf32>
    %c0_6 = arith.constant 0 : index
    %c0_7 = arith.constant 0 : index
    %6 = vector.load %arg2[%c0_6, %c0_7] : memref<8x512xf32, #tpu.memory_space<vmem>>, vector<8x128xf32>
    %7 = arith.subf %6, %3 : vector<8x128xf32>
    %8 = arith.addf %4, %7 : vector<8x128xf32>
    %9 = arith.mulf %7, %7 : vector<8x128xf32>
    %10 = arith.addf %5, %9 : vector<8x128xf32>
    %c0_8 = arith.constant 0 : index
    %c128 = arith.constant 128 : index
    %11 = vector.load %arg2[%c0_8, %c128] : memref<8x512xf32, #tpu.memory_space<vmem>>, vector<8x128xf32>
    %12 = arith.subf %11, %3 : vector<8x128xf32>
    %13 = arith.addf %8, %12 : vector<8x128xf32>
    %14 = arith.mulf %12, %12 : vector<8x128xf32>
    %15 = arith.addf %10, %14 : vector<8x128xf32>
    %c0_9 = arith.constant 0 : index
    %c256 = arith.constant 256 : index
    %16 = vector.load %arg2[%c0_9, %c256] : memref<8x512xf32, #tpu.memory_space<vmem>>, vector<8x128xf32>
    %17 = arith.subf %16, %3 : vector<8x128xf32>
    %18 = arith.addf %13, %17 : vector<8x128xf32>
    %19 = arith.mulf %17, %17 : vector<8x128xf32>
    %20 = arith.addf %15, %19 : vector<8x128xf32>
    %c0_10 = arith.constant 0 : index
    %c384 = arith.constant 384 : index
    %21 = vector.load %arg2[%c0_10, %c384] : memref<8x512xf32, #tpu.memory_space<vmem>>, vector<8x128xf32>
    %22 = arith.subf %21, %3 : vector<8x128xf32>
    %23 = arith.addf %18, %22 : vector<8x128xf32>
    %24 = arith.mulf %22, %22 : vector<8x128xf32>
    %25 = arith.addf %20, %24 : vector<8x128xf32>
    %c0_11 = arith.constant 0 : index
    %c0_12 = arith.constant 0 : index
    %26 = vector.load %arg5[%c0_11, %c0_12] : memref<8x128xf32, #tpu.memory_space<vmem>>, vector<8x128xf32>
    tpu.vector_store %arg5[%c0_11, %c0_12], %23 {strides = array<i32>} : memref<8x128xf32, #tpu.memory_space<vmem>>, vector<8x128xf32>,
    %c0_13 = arith.constant 0 : index
    %c0_14 = arith.constant 0 : index
    %27 = vector.load %arg6[%c0_13, %c0_14] : memref<8x128xf32, #tpu.memory_space<vmem>>, vector<8x128xf32>
    tpu.vector_store %arg6[%c0_13, %c0_14], %25 {strides = array<i32>} : memref<8x128xf32, #tpu.memory_space<vmem>>, vector<8x128xf32>,
    %c0_i32_15 = arith.constant 0 : i32
    %28 = arith.cmpi eq, %arg1, %c0_i32_15 : i32
    %29 = arith.extui %28 : i1 to i32
    %c0_i32_16 = arith.constant 0 : i32
    %30 = arith.cmpi ne, %29, %c0_i32_16 : i32
    scf.if %30 {
      %c0_17 = arith.constant 0 : index
      %c0_18 = arith.constant 0 : index
      %31 = vector.load %arg5[%c0_17, %c0_18] : memref<8x128xf32, #tpu.memory_space<vmem>>, vector<8x128xf32>
      %c0_19 = arith.constant 0 : index
      %c0_20 = arith.constant 0 : index
      %32 = vector.load %arg6[%c0_19, %c0_20] : memref<8x128xf32, #tpu.memory_space<vmem>>, vector<8x128xf32>
      %33 = tpu.iota {dimensions = array<i32: 1>} : vector<8x128xi32>
      %c1_i32 = arith.constant 1 : i32
      %34 = vector.broadcast %c1_i32 : i32 to vector<8x128xi32>
      %35 = arith.andi %33, %34 : vector<8x128xi32>
      %c0_i32_21 = arith.constant 0 : i32
      %36 = vector.broadcast %c0_i32_21 : i32 to vector<8x128xi32>
      %37 = arith.cmpi eq, %35, %36 : vector<8x128xi32>
      %cst = arith.constant 0.000000e+00 : f32
      %38 = vector.broadcast %cst : f32 to vector<8x128xf32>
      %39 = arith.select %37, %31, %38 : vector<8x128xi1>, vector<8x128xf32>
      %cst_22 = arith.constant dense<0.000000e+00> : vector<8xf32>
      %40 = vector.multi_reduction <add>, %39, %cst_22 [1] : vector<8x128xf32> to vector<8xf32>
      %41 = vector.shape_cast %40 : vector<8xf32> to vector<8x1xf32>
      %cst_23 = arith.constant 0.000000e+00 : f32
      %42 = vector.broadcast %cst_23 : f32 to vector<8x128xf32>
      %43 = arith.select %37, %42, %31 : vector<8x128xi1>, vector<8x128xf32>
      %cst_24 = arith.constant dense<0.000000e+00> : vector<8xf32>
      %44 = vector.multi_reduction <add>, %43, %cst_24 [1] : vector<8x128xf32> to vector<8xf32>
      %45 = vector.shape_cast %44 : vector<8xf32> to vector<8x1xf32>
      %cst_25 = arith.constant 0.000000e+00 : f32
      %46 = vector.broadcast %cst_25 : f32 to vector<8x128xf32>
      %47 = arith.select %37, %32, %46 : vector<8x128xi1>, vector<8x128xf32>
      %cst_26 = arith.constant dense<0.000000e+00> : vector<8xf32>
      %48 = vector.multi_reduction <add>, %47, %cst_26 [1] : vector<8x128xf32> to vector<8xf32>
      %49 = vector.shape_cast %48 : vector<8xf32> to vector<8x1xf32>
      %cst_27 = arith.constant 0.000000e+00 : f32
      %50 = vector.broadcast %cst_27 : f32 to vector<8x128xf32>
      %51 = arith.select %37, %50, %32 : vector<8x128xi1>, vector<8x128xf32>
      %cst_28 = arith.constant dense<0.000000e+00> : vector<8xf32>
      %52 = vector.multi_reduction <add>, %51, %cst_28 [1] : vector<8x128xf32> to vector<8xf32>
      %53 = vector.shape_cast %52 : vector<8xf32> to vector<8x1xf32>
      %c0_29 = arith.constant 0 : index
      %c0_30 = arith.constant 0 : index
      %54 = vector.load %arg4[%c0_29, %c0_30] : memref<8x4xf32, #tpu.memory_space<vmem>>, vector<8x1xf32>
      tpu.vector_store %arg4[%c0_29, %c0_30], %41 {strides = array<i32>} : memref<8x4xf32, #tpu.memory_space<vmem>>, vector<8x1xf32>,
      %c0_31 = arith.constant 0 : index
      %c1 = arith.constant 1 : index
      %55 = vector.load %arg4[%c0_31, %c1] : memref<8x4xf32, #tpu.memory_space<vmem>>, vector<8x1xf32>
      tpu.vector_store %arg4[%c0_31, %c1], %45 {strides = array<i32>} : memref<8x4xf32, #tpu.memory_space<vmem>>, vector<8x1xf32>,
      %c0_32 = arith.constant 0 : index
      %c2 = arith.constant 2 : index
      %56 = vector.load %arg4[%c0_32, %c2] : memref<8x4xf32, #tpu.memory_space<vmem>>, vector<8x1xf32>
      tpu.vector_store %arg4[%c0_32, %c2], %49 {strides = array<i32>} : memref<8x4xf32, #tpu.memory_space<vmem>>, vector<8x1xf32>,
      %c0_33 = arith.constant 0 : index
      %c3 = arith.constant 3 : index
      %57 = vector.load %arg4[%c0_33, %c3] : memref<8x4xf32, #tpu.memory_space<vmem>>, vector<8x1xf32>
      tpu.vector_store %arg4[%c0_33, %c3], %53 {strides = array<i32>} : memref<8x4xf32, #tpu.memory_space<vmem>>, vector<8x1xf32>,
    } else {
    }
    return
  }
  func.func @transform_0(%arg0: i32, %arg1: i32) -> (i32, i32) {
    %c0_i32 = arith.constant 0 : i32
    return %arg0, %arg1 : i32, i32
  }
  func.func @transform_1(%arg0: i32, %arg1: i32) -> (i32, i32) {
    %c0_i32 = arith.constant 0 : i32
    %c0_i32_0 = arith.constant 0 : i32
    return %arg0, %c0_i32 : i32, i32
  }
  func.func @transform_2(%arg0: i32, %arg1: i32) -> (i32, i32) {
    %c0_i32 = arith.constant 0 : i32
    %c0_i32_0 = arith.constant 0 : i32
    return %arg0, %c0_i32 : i32, i32
  }
}

</mosaic_0001>

<llo_original>
// kernel: tpu_custom_call.1
$region0: #{tpu_custom_call.1}
  #allocation0 [shape = 'u32[]', space=smem, size = 0x4, offset = 0x4, fixed_abs, tag = 'smem constant byte address 0x4 - core index']
  #allocation1 [shape = 'u32[144,128]{1,0:T(1,128)}', space=vmem, size = 0x12000, scoped, tag = 'internal scratch']
  #allocation2 [shape = 'f32[8,128]{1,0:T(8,128)}', space=vmem, size = 0x1000, scoped, tag = 'scratch operand']
  #allocation3 [shape = 'f32[8,128]{1,0:T(8,128)}', space=vmem, size = 0x1000, scoped, tag = 'scratch operand']
  %s0 = inlined_call_operand.hbm [shape: f32[8,512], index: 0, kind: input, shape index: {}]
  %s1 = inlined_call_operand.hbm [shape: f32[8,128], index: 1, kind: input, shape index: {}]
  %s2 = inlined_call_operand.vmem [shape: f32[8,4], index: 2, kind: output, shape index: {}]
  %s3 = sld [smem:[#allocation0]]
  $region34: #{tpu_custom_call.1} parent=0
    _
  %s5 = ssub.s32 1, %s3
  %s6 = scalar_select 0, %s5, %s3
  $region1: #{tpu_custom_call.1} parent=0
    #allocation4 [shape = 'u8[16384]{0}', space=vmem, size = 0x4000, scoped, tag = 'input window, operand 0, single buffered']
    #allocation5 [shape = 's32[1]{0}', space=sflag, size = 0x4, scoped, tag = 'scoped memory for tpu_custom_call.1']
    #allocation6 [shape = 'u8[4096]{0}', space=vmem, size = 0x1000, scoped, tag = 'input window, operand 1, single buffered']
    #allocation7 [shape = 's32[1]{0}', space=sflag, size = 0x4, scoped, tag = 'scoped memory for tpu_custom_call.1']
    %7 = vsyncpa [#allocation5], 0
    %8 = vsyncpa [#allocation7], 0
    // Predicated region
    $region2: #{tpu_custom_call.1} parent=1 // pred_check
      _
    $region3: #{tpu_custom_call.1} parent=1 // pred_check_branch
      %10 = sbr.rel (0) target = $region5
    $region4: #{tpu_custom_call.1} parent=1 // pred_region
      %s12 = ssub.s32 512, 512
      %13 = vsyncadd [#allocation5], %s12
      %s15 = sshll.u32 [#allocation4], 4
      %s16 = int_to_ptr.vmem [resolvable:$true] %s15
      %18 = dma.hbm_to_vmem [thread:$0]  %s0, 512, %s16, [#allocation5]
    $region5: #{tpu_custom_call.1} parent=1 // pred_fallthru
      _
    // Predicated region
    $region6: #{tpu_custom_call.1} parent=1 // pred_check
      _
    $region7: #{tpu_custom_call.1} parent=1 // pred_check_branch
      %20 = sbr.rel (0) target = $region9
    $region8: #{tpu_custom_call.1} parent=1 // pred_region
      %s22 = ssub.s32 128, 128
      %23 = vsyncadd [#allocation7], %s22
      %s25 = sshll.u32 [#allocation6], 4
      %s26 = int_to_ptr.vmem [resolvable:$true] %s25
      %28 = dma.hbm_to_vmem [thread:$0]  %s1, 128, %s26, [#allocation7]
    $region9: #{tpu_custom_call.1} parent=1 // pred_fallthru
      _
    // Predicated region
    $region10: #{tpu_custom_call.1} parent=1 // pred_check
      _
    $region11: #{tpu_custom_call.1} parent=1 // pred_check_branch
      %30 = sbr.rel (0) target = $region13
    $region12: #{tpu_custom_call.1} parent=1 // pred_region
      %31 = dma.done [#allocation5], 512
    $region13: #{tpu_custom_call.1} parent=1 // pred_fallthru
      _
    // Predicated region
    $region14: #{tpu_custom_call.1} parent=1 // pred_check
      _
    $region15: #{tpu_custom_call.1} parent=1 // pred_check_branch
      %33 = sbr.rel (0) target = $region17
    $region16: #{tpu_custom_call.1} parent=1 // pred_region
      %34 = dma.done [#allocation7], 128
    $region17: #{tpu_custom_call.1} parent=1 // pred_fallthru
      _
    %p35 = scmp.eq.s32.totalorder 0, 0
    // Predicated region
    $region18: #{tpu_custom_call.1} parent=1 // pred_check
      %p36 = pneg %p35
    $region19: #{tpu_custom_call.1} parent=1 // pred_check_branch
      %38 = sbr.rel (%p36) target = $region21
    $region20: #{tpu_custom_call.1} parent=1 // pred_region
      %39 = vst [vmem:[#allocation2] sm:$0xff] 0.0
      %40 = vst [vmem:[#allocation3] sm:$0xff] 0.0
    $region21: #{tpu_custom_call.1} parent=1 // pred_fallthru
      _
    %v41 = vld [vmem:[#allocation6] sm:$0xff]
    %v42 = vld [vmem:[#allocation2] sm:$0xff]
    %v43 = vld [vmem:[#allocation3] sm:$0xff]
    %v44 = vld [vmem:[#allocation4] sm:$0xff]
    %v45 = vsub.f32 %v44, %v41
    %v46 = vadd.f32 %v42, %v45
    %v47 = vmul.f32 %v45, %v45
    %v48 = vadd.f32 %v43, %v47
    %v49 = vld [vmem:[#allocation4 + $0x8] sm:$0xff]
    %v50 = vsub.f32 %v49, %v41
    %v51 = vadd.f32 %v46, %v50
    %v52 = vmul.f32 %v50, %v50
    %v53 = vadd.f32 %v48, %v52
    %v54 = vld [vmem:[#allocation4 + $0x10] sm:$0xff]
    %v55 = vsub.f32 %v54, %v41
    %v56 = vadd.f32 %v51, %v55
    %v57 = vmul.f32 %v55, %v55
    %v58 = vadd.f32 %v53, %v57
    %v59 = vld [vmem:[#allocation4 + $0x18] sm:$0xff]
    %v60 = vsub.f32 %v59, %v41
    %v61 = vadd.f32 %v56, %v60
    %v62 = vmul.f32 %v60, %v60
    %v63 = vadd.f32 %v58, %v62
    %64 = vst [vmem:[#allocation2] sm:$0xff] %v61
    %65 = vst [vmem:[#allocation3] sm:$0xff] %v63
    // Predicated region
    $region22: #{tpu_custom_call.1} parent=1 // pred_check
      %p66 = pneg %p35
    $region23: #{tpu_custom_call.1} parent=1 // pred_check_branch
      %68 = sbr.rel (%p66) target = $region25
    $region24: #{tpu_custom_call.1} parent=1 // pred_region
      %v69 = vld [vmem:[#allocation2] sm:$0xff]
      %v70 = vld [vmem:[#allocation3] sm:$0xff]
      %v71 = vlaneseq
      %v72 = vand.u32 %v71, 127
      %v73 = vand.u32 %v72, 1
      %vm74 = vcmp.eq.s32.totalorder %v73, 0
      %v75 = vsel %vm74, %v69, 0.0
      %76 = vadd.xlane.f32.xlu0 %v75
      %v77 = vpop.xlane.xlu0 %76
      %v78 = vsel %vm74, 0.0, %v69
      %79 = vadd.xlane.f32.xlu0 %v78
      %v80 = vpop.xlane.xlu0 %79
      %v81 = vsel %vm74, %v70, 0.0
      %82 = vadd.xlane.f32.xlu0 %v81
      %v83 = vpop.xlane.xlu0 %82
      %v84 = vsel %vm74, 0.0, %v70
      %85 = vadd.xlane.f32.xlu0 %v84
      %v86 = vpop.xlane.xlu0 %85
      %vm87 = vcmask 7168
      %88 = vst.msk [vmem:[%s2] sm:$0xff] %vm87, %v77
      %vm89 = vcmask 15368
      %90 = vst.msk [vmem:[%s2] sm:$0xff] %vm89, %v80
      %vm91 = vcmask 23568
      %92 = vst.msk [vmem:[%s2] sm:$0xff] %vm91, %v83
      %vm93 = vcmask 31768
      %94 = vst.msk [vmem:[%s2] sm:$0xff] %vm93, %v86
    $region25: #{tpu_custom_call.1} parent=1 // pred_fallthru
      _
    // Predicated region
    $region26: #{tpu_custom_call.1} parent=1 // pred_check
      _
    $region27: #{tpu_custom_call.1} parent=1 // pred_check_branch
      %96 = sbr.rel (0) target = $region29
    $region28: #{tpu_custom_call.1} parent=1 // pred_region
      _
    $region29: #{tpu_custom_call.1} parent=1 // pred_fallthru
      _
    // Predicated region
    $region30: #{tpu_custom_call.1} parent=1 // pred_check
      _
    $region31: #{tpu_custom_call.1} parent=1 // pred_check_branch
      %98 = sbr.rel (0) target = $region33
    $region32: #{tpu_custom_call.1} parent=1 // pred_region
      _
    $region33: #{tpu_custom_call.1} parent=1 // pred_fallthru
      _
    %99 = vsyncpa [#allocation5], 1
    %100 = vsyncpa [#allocation7], 1

</llo_original>
